<compile_context>
chip_gen: v6e
topology: v6e:2x2x1
jax: 0.10.0
libtpu: 0.0.40
codegen_flags: <defaults>
</compile_context>

<pallas_src>
import jax
import jax.numpy as jnp
from jax.experimental import pallas as pl
from jax.experimental.pallas import tpu as pltpu

_NEG_FILL = -1.0e30  # finite "minus infinity" for padded class lanes


def _round_up(x, m):
    return ((x + m - 1) // m) * m


def _make_ce_kernel(inv_n):
    """inv_n = 1 / (number of *real* rows), baked in as a static constant."""

    def kernel(logits_ref, tgt_ref, o_ref):
        step = pl.program_id(0)

        # Zero the resident accumulator on the first grid step.
        @pl.when(step == 0)
        def _init():
            o_ref[...] = jnp.zeros_like(o_ref)

        x = logits_ref[...].astype(jnp.float32)   # (TB, C_pad)
        t = tgt_ref[...]                          # (TB, 1) int32, -1 == padded row

        # Numerically stable log-sum-exp per row.
        m = jnp.max(x, axis=-1, keepdims=True)                      # (TB, 1)
        lse = m + jnp.log(jnp.sum(jnp.exp(x - m), axis=-1, keepdims=True))

        # Gather input[i, target[i]] as a lane-wise one-hot reduction (no gather op).
        col = jax.lax.broadcasted_iota(jnp.int32, x.shape, 1)       # (TB, C_pad)
        onehot = (col == t).astype(jnp.float32)
        picked = jnp.sum(x * onehot, axis=-1, keepdims=True)        # (TB, 1)

        # Mask out padded rows (target == -1).
        valid = (t >= 0).astype(jnp.float32)                        # (TB, 1)
        per_row = (lse - picked) * valid                            # (TB, 1)

        # Accumulate the block partial sum into the resident (1,1) output block.
        o_ref[...] += jnp.sum(per_row, axis=0, keepdims=True)

        # Finalize: divide by the real batch size on the last step.
        @pl.when(step == pl.num_programs(0) - 1)
        def _final():
            o_ref[...] = o_ref[...] * inv_n

    return kernel


def cross_entropy_loss(logits, targets, *, block_rows=256):
    """Mean cross-entropy loss of `logits` (N, C) against int targets (N,)."""
    N, C = logits.shape

    # Lane-dense class dim (multiple of 128); 8-aligned row tile.
    C_pad = _round_up(C, 128)
    TB = min(block_rows, _round_up(N, 8))
    N_pad = _round_up(N, TB)

    # Pad classes with a huge negative (so exp underflows to 0), then pad rows
    # with zeros (those rows are masked via target = -1 inside the kernel).
    lp = jnp.pad(logits.astype(jnp.float32), ((0, 0), (0, C_pad - C)),
                 constant_values=_NEG_FILL)
    lp = jnp.pad(lp, ((0, N_pad - N), (0, 0)))
    tp = jnp.pad(targets.astype(jnp.int32), ((0, N_pad - N),),
                 constant_values=-1).reshape(N_pad, 1)

    grid = (N_pad // TB,)

    # Working set per step: logits tile + target tile, double-buffered; keep a
    # generous floor but stay far below physical VMEM (64 MiB on v7x).
    block_bytes = TB * C_pad * 4 + TB * 4
    vmem_limit = max(8 << 20, 4 * block_bytes)

    out = pl.pallas_call(
        _make_ce_kernel(1.0 / float(N)),
        out_shape=jax.ShapeDtypeStruct((1, 1), jnp.float32),
        grid_spec=pltpu.PrefetchScalarGridSpec(
            num_scalar_prefetch=0,
            grid=grid,
            in_specs=[
                pl.BlockSpec((TB, C_pad), lambda i: (i, 0)),
                pl.BlockSpec((TB, 1), lambda i: (i, 0)),
            ],
            out_specs=pl.BlockSpec((1, 1), lambda i: (0, 0)),
        ),
        compiler_params=pltpu.CompilerParams(
            # The row axis is a reduction into the resident output block, so it
            # must be "arbitrary" (sequential accumulation), not "parallel".
            dimension_semantics=("arbitrary",),
            vmem_limit_bytes=vmem_limit,
        ),
    )(lp, tp)

    return out[0, 0]


def reference_cross_entropy(logits, targets):
    logp = jax.nn.log_softmax(logits.astype(jnp.float32), axis=-1)
    nll = -jnp.take_along_axis(logp, targets[:, None].astype(jnp.int32), axis=-1)[:, 0]
    return jnp.mean(nll)


if __name__ == "__main__":
    key = jax.random.PRNGKey(0)
    k_logits, k_tgt = jax.random.split(key)

    N = 12       # batch (not a multiple of 8/TB -> exercises the masking path)
    C = 10       # num classes (padded to 128 lanes inside the wrapper)

    logits = jax.random.normal(k_logits, (N, C), jnp.float32) * 3.0
    targets = jax.random.randint(k_tgt, (N,), 0, C, dtype=jnp.int32)

    loss = cross_entropy_loss(logits, targets)
    loss = jax.block_until_ready(loss)

    ref = reference_cross_entropy(logits, targets)
    assert loss.shape == ()
    assert jnp.allclose(loss, ref, atol=1e-4, rtol=1e-4), (loss, ref)

    print("KERNEL_OK")
</pallas_src>

<mosaic_0001>
module attributes {stable_mosaic.version = 11 : i64} {
  func.func @kernel(%arg0: i32, %arg1: memref<16x128xf32, #tpu.memory_space<vmem>>, %arg2: memref<16x1xi32, #tpu.memory_space<vmem>>, %arg3: memref<1x1xf32, #tpu.memory_space<vmem>>) attributes {dimension_semantics = [#tpu.dimension_semantics<arbitrary>], iteration_bounds = array<i64: 1>, scalar_prefetch = 0 : i64, scratch_operands = 0 : i64, tpu.core_type = #tpu.core_type<tc>, window_params = [{transform_indices = @transform_0, window_bounds = array<i64: 16, 128>}, {transform_indices = @transform_1, window_bounds = array<i64: 16, 1>}, {pipeline_mode = #tpu.pipeline_mode<synchronous>, transform_indices = @transform_2, window_bounds = array<i64: 1, 1>}]} {
    %c0_i32 = arith.constant 0 : i32
    %0 = arith.cmpi eq, %arg0, %c0_i32 : i32
    %1 = arith.extui %0 : i1 to i32
    %c0_i32_0 = arith.constant 0 : i32
    %2 = arith.cmpi ne, %1, %c0_i32_0 : i32
    scf.if %2 {
      %cst_14 = arith.constant 0.000000e+00 : f32
      %36 = vector.broadcast %cst_14 : f32 to vector<1x1xf32>
      %c0_15 = arith.constant 0 : index
      %c0_16 = arith.constant 0 : index
      %37 = vector.load %arg3[%c0_15, %c0_16] : memref<1x1xf32, #tpu.memory_space<vmem>>, vector<1x1xf32>
      tpu.vector_store %arg3[%c0_15, %c0_16], %36 {strides = array<i32>} : memref<1x1xf32, #tpu.memory_space<vmem>>, vector<1x1xf32>,
    } else {
    }
    %c0 = arith.constant 0 : index
    %c0_1 = arith.constant 0 : index
    %3 = vector.load %arg1[%c0, %c0_1] : memref<16x128xf32, #tpu.memory_space<vmem>>, vector<16x128xf32>
    %c0_2 = arith.constant 0 : index
    %c0_3 = arith.constant 0 : index
    %4 = vector.load %arg2[%c0_2, %c0_3] : memref<16x1xi32, #tpu.memory_space<vmem>>, vector<16x1xi32>
    %cst = arith.constant dense<0xFF800000> : vector<16xf32>
    %5 = vector.multi_reduction <maximumf>, %3, %cst [1] : vector<16x128xf32> to vector<16xf32>
    %6 = vector.shape_cast %5 : vector<16xf32> to vector<16x1xf32>
    %7 = vector.broadcast %6 : vector<16x1xf32> to vector<16x128xf32>
    %8 = arith.subf %3, %7 : vector<16x128xf32>
    %9 = math.exp %8 : vector<16x128xf32>
    %cst_4 = arith.constant dense<0.000000e+00> : vector<16xf32>
    %10 = vector.multi_reduction <add>, %9, %cst_4 [1] : vector<16x128xf32> to vector<16xf32>
    %11 = vector.shape_cast %10 : vector<16xf32> to vector<16x1xf32>
    %12 = math.log %11 : vector<16x1xf32>
    %13 = arith.addf %6, %12 : vector<16x1xf32>
    %14 = tpu.iota {dimensions = array<i32: 1>} : vector<16x128xi32>
    %15 = vector.broadcast %4 : vector<16x1xi32> to vector<16x128xi32>
    %16 = arith.cmpi eq, %14, %15 : vector<16x128xi32>
    %17 = arith.extui %16 : vector<16x128xi1> to vector<16x128xi32>
    %18 = arith.sitofp %17 : vector<16x128xi32> to vector<16x128xf32>
    %19 = arith.mulf %3, %18 : vector<16x128xf32>
    %cst_5 = arith.constant dense<0.000000e+00> : vector<16xf32>
    %20 = vector.multi_reduction <add>, %19, %cst_5 [1] : vector<16x128xf32> to vector<16xf32>
    %21 = vector.shape_cast %20 : vector<16xf32> to vector<16x1xf32>
    %c0_i32_6 = arith.constant 0 : i32
    %22 = vector.broadcast %c0_i32_6 : i32 to vector<16x1xi32>
    %23 = arith.cmpi sge, %4, %22 : vector<16x1xi32>
    %24 = arith.extui %23 : vector<16x1xi1> to vector<16x1xi32>
    %25 = arith.sitofp %24 : vector<16x1xi32> to vector<16x1xf32>
    %26 = arith.subf %13, %21 : vector<16x1xf32>
    %27 = arith.mulf %26, %25 : vector<16x1xf32>
    %c0_7 = arith.constant 0 : index
    %c0_8 = arith.constant 0 : index
    %28 = vector.load %arg3[%c0_7, %c0_8] : memref<1x1xf32, #tpu.memory_space<vmem>>, vector<1x1xf32>
    %cst_9 = arith.constant dense<0.000000e+00> : vector<1xf32>
    %29 = vector.multi_reduction <add>, %27, %cst_9 [0] : vector<16x1xf32> to vector<1xf32>
    %30 = vector.shape_cast %29 : vector<1xf32> to vector<1x1xf32>
    %31 = arith.addf %28, %30 : vector<1x1xf32>
    %c0_10 = arith.constant 0 : index
    %c0_11 = arith.constant 0 : index
    %32 = vector.load %arg3[%c0_10, %c0_11] : memref<1x1xf32, #tpu.memory_space<vmem>>, vector<1x1xf32>
    tpu.vector_store %arg3[%c0_10, %c0_11], %31 {strides = array<i32>} : memref<1x1xf32, #tpu.memory_space<vmem>>, vector<1x1xf32>,
    %c0_i32_12 = arith.constant 0 : i32
    %33 = arith.cmpi eq, %arg0, %c0_i32_12 : i32
    %34 = arith.extui %33 : i1 to i32
    %c0_i32_13 = arith.constant 0 : i32
    %35 = arith.cmpi ne, %34, %c0_i32_13 : i32
    scf.if %35 {
      %c0_14 = arith.constant 0 : index
      %c0_15 = arith.constant 0 : index
      %36 = vector.load %arg3[%c0_14, %c0_15] : memref<1x1xf32, #tpu.memory_space<vmem>>, vector<1x1xf32>
      %cst_16 = arith.constant 0.0833333358 : f32
      %37 = vector.broadcast %cst_16 : f32 to vector<1x1xf32>
      %38 = arith.mulf %36, %37 : vector<1x1xf32>
      %c0_17 = arith.constant 0 : index
      %c0_18 = arith.constant 0 : index
      %39 = vector.load %arg3[%c0_17, %c0_18] : memref<1x1xf32, #tpu.memory_space<vmem>>, vector<1x1xf32>
      tpu.vector_store %arg3[%c0_17, %c0_18], %38 {strides = array<i32>} : memref<1x1xf32, #tpu.memory_space<vmem>>, vector<1x1xf32>,
    } else {
    }
    return
  }
  func.func @transform_0(%arg0: i32) -> (i32, i32) {
    %c0_i32 = arith.constant 0 : i32
    %c0_i32_0 = arith.constant 0 : i32
    return %arg0, %c0_i32 : i32, i32
  }
  func.func @transform_1(%arg0: i32) -> (i32, i32) {
    %c0_i32 = arith.constant 0 : i32
    %c0_i32_0 = arith.constant 0 : i32
    return %arg0, %c0_i32 : i32, i32
  }
  func.func @transform_2(%arg0: i32) -> (i32, i32) {
    %c0_i32 = arith.constant 0 : i32
    %c0_i32_0 = arith.constant 0 : i32
    %c0_i32_1 = arith.constant 0 : i32
    return %c0_i32, %c0_i32_0 : i32, i32
  }
}

</mosaic_0001>

<llo_original>
// kernel: tpu_custom_call.1
$region0: #{tpu_custom_call.1}
  #allocation0 [shape = 'u32[]', space=smem, size = 0x4, offset = 0x4, fixed_abs, tag = 'smem constant byte address 0x4 - core index']
  #allocation1 [shape = 'u32[144,128]{1,0:T(1,128)}', space=vmem, size = 0x12000, scoped, tag = 'internal scratch']
  %s0 = inlined_call_operand.vmem [shape: f32[16,128], index: 0, kind: input, shape index: {}]
  %s1 = inlined_call_operand.vmem [shape: s32[16,1], index: 1, kind: input, shape index: {}]
  %s2 = inlined_call_operand.hbm [shape: f32[1,1], index: 2, kind: output, shape index: {}]
  %s3 = sld [smem:[#allocation0]]
  $region26: #{tpu_custom_call.1} parent=0
    _
  %s5 = ssub.s32 1, %s3
  %s6 = scalar_select 0, %s5, %s3
  $region1: #{tpu_custom_call.1} parent=0
    #allocation2 [shape = 'u8[512]{0}', space=vmem, size = 0x400, scoped, tag = 'output window, operand 0, single buffered']
    #allocation3 [shape = 's32[1]{0}', space=sflag, size = 0x4, scoped, tag = 'scoped memory for tpu_custom_call.1']
    %7 = vsyncpa [#allocation3], 0
    // Predicated region
    $region2: #{tpu_custom_call.1} parent=1 // pred_check
      _
    $region3: #{tpu_custom_call.1} parent=1 // pred_check_branch
      %9 = sbr.rel (0) target = $region5
    $region4: #{tpu_custom_call.1} parent=1 // pred_region
      _
    $region5: #{tpu_custom_call.1} parent=1 // pred_fallthru
      _
    // Predicated region
    $region6: #{tpu_custom_call.1} parent=1 // pred_check
      _
    $region7: #{tpu_custom_call.1} parent=1 // pred_check_branch
      %11 = sbr.rel (0) target = $region9
    $region8: #{tpu_custom_call.1} parent=1 // pred_region
      _
    $region9: #{tpu_custom_call.1} parent=1 // pred_fallthru
      _
    %p12 = scmp.eq.s32.totalorder 0, 0
    // Predicated region
    $region10: #{tpu_custom_call.1} parent=1 // pred_check
      %p13 = pneg %p12
    $region11: #{tpu_custom_call.1} parent=1 // pred_check_branch
      %15 = sbr.rel (%p13) target = $region13
    $region12: #{tpu_custom_call.1} parent=1 // pred_region
      %vm16 = vcmask 0
      %17 = vst.msk [vmem:[#allocation2] sm:$0x1] %vm16, 0.0
    $region13: #{tpu_custom_call.1} parent=1 // pred_fallthru
      _
    %v18 = vld [vmem:[%s0] sm:$0xff]
    %v19 = vld [vmem:[%s0 + $0x8] sm:$0xff]
    %v20 = vld [vmem:[%s1] sm:$0xff]
    %v21 = vld [vmem:[%s1 + $0x8] sm:$0xff]
    %22 = vmax.xlane.f32.xlu0 %v18
    %v23 = vpop.xlane.xlu0 %22
    %24 = vmax.xlane.f32.xlu0 %v19
    %v25 = vpop.xlane.xlu0 %24
    %v26 = vsub.f32 %v18, %v23
    %v27 = vsub.f32 %v19, %v25
    %v28 = vmul.f32 %v26, 1.442695
    %v29 = vpow.pop %v28
    %v30 = vmul.f32 %v27, 1.442695
    %v31 = vpow.pop %v30
    %32 = vadd.xlane.f32.xlu0 %v29
    %v33 = vpop.xlane.xlu0 %32
    %34 = vadd.xlane.f32.xlu0 %v31
    %v35 = vpop.xlane.xlu0 %34
    %v36 = vlog2.pop %v33
    %v37 = vmul.f32 %v36, 0.6931472
    %v38 = vlog2.pop %v35
    %v39 = vmul.f32 %v38, 0.6931472
    %v40 = vadd.f32 %v23, %v37
    %v41 = vadd.f32 %v25, %v39
    %v42 = vlaneseq
    %v43 = vand.u32 %v42, 127
    %44 = vset.pattern.permute.xlu0 0
    %45 = vperm.xlu0 %44, %v20
    %v46 = vpop.permute.xlu0 %45
    %47 = vset.pattern.permute.xlu0 0
    %48 = vperm.xlu0 %47, %v21
    %v49 = vpop.permute.xlu0 %48
    %vm50 = vcmp.eq.s32.totalorder %v43, %v46
    %vm51 = vcmp.eq.s32.totalorder %v43, %v49
    %v52 = vsel %vm50, 1, 0
    %v53 = vsel %vm51, 1, 0
    %v54 = vcvt.s32.f32 %v52
    %v55 = vcvt.s32.f32 %v53
    %v56 = vmul.f32 %v18, %v54
    %v57 = vmul.f32 %v19, %v55
    %58 = vadd.xlane.f32.xlu0 %v56
    %v59 = vpop.xlane.xlu0 %58
    %60 = vadd.xlane.f32.xlu0 %v57
    %v61 = vpop.xlane.xlu0 %60
    %vm62 = vcmp.ge.s32.totalorder %v20, 0
    %vm63 = vcmp.ge.s32.totalorder %v21, 0
    %v64 = vsel %vm62, 1, 0
    %v65 = vsel %vm63, 1, 0
    %v66 = vcvt.s32.f32 %v64
    %v67 = vcvt.s32.f32 %v65
    %v68 = vsub.f32 %v40, %v59
    %v69 = vsub.f32 %v41, %v61
    %v70 = vmul.f32 %v68, %v66
    %v71 = vmul.f32 %v69, %v67
    %v72 = vld [vmem:[#allocation2] sm:$0x1]
    %vm73 = vcmask 7168
    %v74 = vsel %vm73, %v70, 0.0
    %v75 = vsel %vm73, %v71, 0.0
    %v76 = vadd.f32 %v74, %v75
    %v77 = vrot.slane %v76, 4
    %v78 = vadd.f32 %v76, %v77
    %v79 = vrot.slane %v78, 2
    %v80 = vadd.f32 %v78, %v79
    %v81 = vrot.slane %v80, 1
    %v82 = vadd.f32 %v80, %v81
    %v83 = vadd.f32 %v72, %v82
    %vm84 = vcmask 0
    %85 = vst.msk [vmem:[#allocation2] sm:$0x1] %vm84, %v83
    // Predicated region
    $region14: #{tpu_custom_call.1} parent=1 // pred_check
      %p86 = pneg %p12
    $region15: #{tpu_custom_call.1} parent=1 // pred_check_branch
      %88 = sbr.rel (%p86) target = $region17
    $region16: #{tpu_custom_call.1} parent=1 // pred_region
      %v89 = vld [vmem:[#allocation2] sm:$0x1]
      %v90 = vmul.f32 %v89, 0.083333336
      %91 = vst.msk [vmem:[#allocation2] sm:$0x1] %vm84, %v90
    $region17: #{tpu_custom_call.1} parent=1 // pred_fallthru
      _
    // Predicated region
    $region18: #{tpu_custom_call.1} parent=1 // pred_check
      _
    $region19: #{tpu_custom_call.1} parent=1 // pred_check_branch
      %93 = sbr.rel (0) target = $region21
    $region20: #{tpu_custom_call.1} parent=1 // pred_region
      %s95 = ssub.s32 16, 16
      %96 = vsyncadd [#allocation3], %s95
      %s98 = sshll.u32 [#allocation2], 4
      %s99 = int_to_ptr.vmem [resolvable:$true] %s98
      %101 = dma.vmem_to_hbm [thread:$0]  %s99, 16, %s2, [#allocation3]
    $region21: #{tpu_custom_call.1} parent=1 // pred_fallthru
      _
    // Predicated region
    $region22: #{tpu_custom_call.1} parent=1 // pred_check
      _
    $region23: #{tpu_custom_call.1} parent=1 // pred_check_branch
      %103 = sbr.rel (0) target = $region25
    $region24: #{tpu_custom_call.1} parent=1 // pred_region
      %104 = dma.done [#allocation3], 16
    $region25: #{tpu_custom_call.1} parent=1 // pred_fallthru
      _
    %105 = vsyncpa [#allocation3], 1

</llo_original>
